<compile_context>
chip_gen: v5e
topology: v5e:2x2
jax: 0.10.0
libtpu: 0.0.40
codegen_flags: <defaults>
</compile_context>

<pallas_src>
import functools

import jax
import jax.numpy as jnp
import numpy as np
from jax import lax
from jax.experimental import pallas as pl
from jax.experimental.pallas import tpu as pltpu

_LANE = 128       # lane width of a vreg
_MAX_SLABS = 64   # cap on the statically-unrolled per-step slab loop (tile_s <= 8192)


def _make_kernel(N, C, n_slab, tile_s, s_per_split, hw_valid, needs_mask):
    """Builds the fused streaming-reduction kernel for fixed static shapes."""

    def kernel(p_ref, t_ref, inter_ref, usq_ref, tsum_ref):
        s = pl.program_id(1)

        # init the resident output accumulators at the first spatial step
        @pl.when(s == 0)
        def _init():
            inter_ref[...] = jnp.zeros_like(inter_ref)
            usq_ref[...] = jnp.zeros_like(usq_ref)
            tsum_ref[...] = jnp.zeros_like(tsum_ref)

        # channel iota for the lazy one-hot: computed once per step, reused
        # by every slab (JAX does not CSE broadcast_in_dim).
        ch = lax.broadcasted_iota(jnp.int32, (N, C, _LANE), 1)
        if needs_mask:
            lane = lax.broadcasted_iota(jnp.int32, (1, 1, _LANE), 2)
            base = (pl.program_id(0) * s_per_split + s) * tile_s

        # vreg-resident accumulators; one ref += per grid step at the end.
        acc_i = jnp.zeros((N, C, _LANE), jnp.float32)
        acc_u = jnp.zeros((N, C, _LANE), jnp.float32)
        acc_t = jnp.zeros((N, C, _LANE), jnp.float32)

        for j in range(n_slab):                       # static unroll over slabs
            lo = j * _LANE
            p = p_ref[:, :, lo:lo + _LANE].astype(jnp.float32)   # (N, C, 128)
            t = t_ref[:, :, lo:lo + _LANE]                       # (N, 1, 128) int32

            # numerically-stable softmax over channels (axis=1)
            m = jnp.max(p, axis=1, keepdims=True)
            e = jnp.exp(p - m)
            probs = e * pl.reciprocal(jnp.sum(e, axis=1, keepdims=True),
                                      approx=False)

            # lazy one-hot as a float mask (padded target columns hold class=C
            # so they never match and contribute 0 to inter/tsum).
            onehot = (ch == t).astype(jnp.float32)
            psq = probs * probs
            if needs_mask:
                # union term must also exclude padded columns
                valid = (base + lo + lane) < hw_valid            # (1, 1, 128)
                psq = jnp.where(valid, psq, 0.0)

            acc_i = acc_i + probs * onehot
            acc_u = acc_u + psq
            acc_t = acc_t + onehot

        inter_ref[...] = inter_ref[...] + acc_i[None]
        usq_ref[...] = usq_ref[...] + acc_u[None]
        tsum_ref[...] = tsum_ref[...] + acc_t[None]

    return kernel


def _vmem_limit_bytes():
    """Scoped-VMEM limit: ~3/4 of this chip's physical VMEM (48 MiB v7x fallback)."""
    try:
        phys = int(getattr(pltpu.get_tpu_info(), "vmem_capacity_bytes", 64 << 20))
    except Exception:
        phys = 64 << 20
    return max(32 << 20, phys * 3 // 4)


def _num_tensorcores():
    """Best-effort TensorCore count; defaults to 1 (safe serial path)."""
    candidates = ("num_cores", "core_count", "num_tensorcores",
                  "tensorcore_count", "num_cores_per_chip", "cores_per_chip")
    for src in (lambda: pltpu.get_tpu_info(), lambda: jax.devices()[0]):
        try:
            obj = src()
        except Exception:
            continue
        for name in candidates:
            v = getattr(obj, name, None)
            if isinstance(v, int) and 1 <= v <= 8:
                return v
    return 1


def _pick_tile_s(N, C, hw, n_split, pred_bytes, vmem_limit):
    """Largest 128-multiple tile that fits VMEM (double-buffered) and the
    static-unroll cap, clamped to what the (split of the) spatial range needs."""
    pack = 8 * max(1, 4 // pred_bytes)                 # sublane packing f32->8, bf16->16
    c_pad = -(-C // pack) * pack
    per_unit = (2 * N * c_pad * _LANE * pred_bytes     # predict block, double-buffered
                + 2 * N * 8 * _LANE * 4)               # target block (1->8 sublane pad)
    c_pad8 = -(-C // 8) * 8
    fixed = 6 * N * c_pad8 * _LANE * 4 + (4 << 20)     # 3 f32 output blocks + margin
    budget = max(vmem_limit - fixed, per_unit)
    units_vmem = max(1, budget // per_unit)
    units_needed = -(-hw // (n_split * _LANE))
    units = max(1, min(_MAX_SLABS, units_vmem, units_needed))
    return int(units) * _LANE


@functools.partial(jax.jit, static_argnames=("tile_s", "n_split", "core_parallel",
                                             "hw_valid", "needs_mask", "vmem_limit"))
def _cdice_partials(predict_flat, target_flat, *, tile_s, n_split, core_parallel,
                    hw_valid, needs_mask, vmem_limit):
    N, C, HWp = predict_flat.shape
    s_per_split = HWp // (n_split * tile_s)
    n_slab = tile_s // _LANE
    grid = (n_split, s_per_split)

    kernel = _make_kernel(N, C, n_slab, tile_s, s_per_split, hw_valid, needs_mask)

    in_specs = [
        pl.BlockSpec((N, C, tile_s), lambda c, s: (0, 0, c * s_per_split + s)),
        pl.BlockSpec((N, 1, tile_s), lambda c, s: (0, 0, c * s_per_split + s)),
    ]
    out_spec = pl.BlockSpec((1, N, C, _LANE), lambda c, s: (c, 0, 0, 0))
    out_shapes = tuple(jax.ShapeDtypeStruct((n_split, N, C, _LANE), jnp.float32)
                       for _ in range(3))

    if core_parallel:
        dims = (pltpu.CORE_PARALLEL, pltpu.ARBITRARY)
    else:
        dims = ("arbitrary", "arbitrary")

    return pl.pallas_call(
        kernel,
        out_shape=out_shapes,
        grid_spec=pltpu.PrefetchScalarGridSpec(
            num_scalar_prefetch=0,
            grid=grid,
            in_specs=in_specs,
            out_specs=(out_spec, out_spec, out_spec),
        ),
        compiler_params=pltpu.CompilerParams(
            dimension_semantics=dims,
            vmem_limit_bytes=int(vmem_limit)),
    )(predict_flat, target_flat)


def cdice_loss(predict, target, class_weight=None, loss_weight=1.0,
               reduction="mean", smooth=1e-6):
    """predict: (N, C, H, W) float32/bfloat16, target: (N, H, W) int class indices."""
    # TODO(synk): per-sample `weight` / `avg_factor` path of weight_reduce_loss
    # is not implemented (matches the default None arguments of the module).
    N, C, H, W = predict.shape
    HW = H * W

    # stream predict in its native dtype (bf16 halves HBM traffic); upcast to
    # f32 per slab inside the kernel.
    pred = predict if predict.dtype in (jnp.bfloat16, jnp.float32) \
        else predict.astype(jnp.float32)
    predict_flat = pred.reshape(N, C, HW)
    target_flat = target.reshape(N, 1, HW).astype(jnp.int32)
    pred_bytes = predict_flat.dtype.itemsize

    vmem_limit = _vmem_limit_bytes()
    cores = _num_tensorcores()

    def run(n_split, core_parallel):
        tile_s = _pick_tile_s(N, C, HW, n_split, pred_bytes, vmem_limit)
        chunk = n_split * tile_s
        hw_pad = ((HW + chunk - 1) // chunk) * chunk
        needs_mask = hw_pad != HW
        pf, tf = predict_flat, target_flat
        if needs_mask:
            pad = hw_pad - HW
            pf = jnp.pad(pf, ((0, 0), (0, 0), (0, pad)))
            tf = jnp.pad(tf, ((0, 0), (0, 0), (0, pad)), constant_values=C)
        parts = _cdice_partials(pf, tf, tile_s=tile_s, n_split=n_split,
                                core_parallel=core_parallel, hw_valid=HW,
                                needs_mask=needs_mask, vmem_limit=vmem_limit)
        return jax.block_until_ready(parts)

    parts = None
    if cores >= 2 and HW > 2 * _LANE:
        try:  # dual-TensorCore (v7x) path; fall back to serial on any failure
            parts = run(2, True)
        except Exception:
            parts = None
    if parts is None:
        parts = run(1, False)

    inter_p, usq_p, tsum_p = parts
    inter = jnp.sum(inter_p, axis=(0, 3))                           # (N, C)
    union = jnp.sum(usq_p, axis=(0, 3)) + jnp.sum(tsum_p, axis=(0, 3))
    class_wise_loss = (2.0 * inter + smooth) / (union + smooth)

    if class_weight is not None:
        class_wise_loss = class_wise_loss * jnp.asarray(
            class_weight, dtype=class_wise_loss.dtype)

    if reduction == "mean":
        reduced = jnp.mean(class_wise_loss)
    elif reduction == "sum":
        reduced = jnp.sum(class_wise_loss)
    else:  # "none"
        reduced = class_wise_loss
    return loss_weight * (1.0 - reduced)


def _cdice_loss_ref(predict, target, class_weight, loss_weight, smooth=1e-6):
    """Pure-JAX reference mirroring the PyTorch forward (reduction='mean')."""
    N, C, H, W = predict.shape
    probs = jax.nn.softmax(predict.astype(jnp.float32), axis=1)
    onehot = jax.nn.one_hot(target, C, axis=1, dtype=jnp.float32)
    inter = jnp.sum(probs * onehot, axis=(2, 3))
    union = jnp.sum(probs * probs, axis=(2, 3)) + jnp.sum(onehot, axis=(2, 3))
    cwl = (2.0 * inter + smooth) / (union + smooth)
    if class_weight is not None:
        cwl = cwl * jnp.asarray(class_weight, dtype=cwl.dtype)
    return loss_weight * (1.0 - jnp.mean(cwl))


if __name__ == "__main__":
    key = jax.random.PRNGKey(0)
    kp, kt = jax.random.split(key)

    N, C, H, W = 2, 4, 16, 16
    predict = jax.random.normal(kp, (N, C, H, W), dtype=jnp.float32)
    target = jax.random.randint(kt, (N, H, W), 0, C, dtype=jnp.int32)

    # deterministic "module parameters" (class_weight list from __init__)
    class_weight = [0.5, 1.0, 1.5, 2.0]
    loss_weight = 1.0

    loss = cdice_loss(predict, target, class_weight=class_weight,
                      loss_weight=loss_weight, reduction="mean")
    loss = jax.block_until_ready(loss)

    loss_ref = jax.block_until_ready(
        _cdice_loss_ref(predict, target, class_weight, loss_weight))

    if not np.allclose(np.asarray(loss), np.asarray(loss_ref),
                       rtol=1e-3, atol=1e-4):
        raise AssertionError(f"mismatch: pallas={loss} ref={loss_ref}")
    print("KERNEL_OK")
</pallas_src>

<mosaic_0001>
module attributes {stable_mosaic.version = 11 : i64} {
  func.func @kernel(%arg0: i32, %arg1: i32, %arg2: memref<2x4x256xf32, #tpu.memory_space<vmem>>, %arg3: memref<2x1x256xi32, #tpu.memory_space<vmem>>, %arg4: memref<1x2x4x128xf32, #tpu.memory_space<vmem>>, %arg5: memref<1x2x4x128xf32, #tpu.memory_space<vmem>>, %arg6: memref<1x2x4x128xf32, #tpu.memory_space<vmem>>) attributes {dimension_semantics = [#tpu.dimension_semantics<arbitrary>, #tpu.dimension_semantics<arbitrary>], iteration_bounds = array<i64: 1, 1>, scalar_prefetch = 0 : i64, scratch_operands = 0 : i64, tpu.core_type = #tpu.core_type<tc>, window_params = [{transform_indices = @transform_0, window_bounds = array<i64: 2, 4, 256>}, {transform_indices = @transform_1, window_bounds = array<i64: 2, 1, 256>}, {transform_indices = @transform_2, window_bounds = array<i64: 1, 2, 4, 128>}, {transform_indices = @transform_3, window_bounds = array<i64: 1, 2, 4, 128>}, {transform_indices = @transform_4, window_bounds = array<i64: 1, 2, 4, 128>}]} {
    %c0_i32 = arith.constant 0 : i32
    %0 = arith.cmpi eq, %arg1, %c0_i32 : i32
    %1 = arith.extui %0 : i1 to i32
    %c0_i32_0 = arith.constant 0 : i32
    %2 = arith.cmpi ne, %1, %c0_i32_0 : i32
    scf.if %2 {
      %cst_41 = arith.constant 0.000000e+00 : f32
      %61 = vector.broadcast %cst_41 : f32 to vector<1x2x4x128xf32>
      %c0_42 = arith.constant 0 : index
      %c0_43 = arith.constant 0 : index
      %c0_44 = arith.constant 0 : index
      %c0_45 = arith.constant 0 : index
      %62 = vector.load %arg4[%c0_42, %c0_43, %c0_44, %c0_45] : memref<1x2x4x128xf32, #tpu.memory_space<vmem>>, vector<1x2x4x128xf32>
      tpu.vector_store %arg4[%c0_42, %c0_43, %c0_44, %c0_45], %61 {strides = array<i32>} : memref<1x2x4x128xf32, #tpu.memory_space<vmem>>, vector<1x2x4x128xf32>,
      %cst_46 = arith.constant 0.000000e+00 : f32
      %63 = vector.broadcast %cst_46 : f32 to vector<1x2x4x128xf32>
      %c0_47 = arith.constant 0 : index
      %c0_48 = arith.constant 0 : index
      %c0_49 = arith.constant 0 : index
      %c0_50 = arith.constant 0 : index
      %64 = vector.load %arg5[%c0_47, %c0_48, %c0_49, %c0_50] : memref<1x2x4x128xf32, #tpu.memory_space<vmem>>, vector<1x2x4x128xf32>
      tpu.vector_store %arg5[%c0_47, %c0_48, %c0_49, %c0_50], %63 {strides = array<i32>} : memref<1x2x4x128xf32, #tpu.memory_space<vmem>>, vector<1x2x4x128xf32>,
      %cst_51 = arith.constant 0.000000e+00 : f32
      %65 = vector.broadcast %cst_51 : f32 to vector<1x2x4x128xf32>
      %c0_52 = arith.constant 0 : index
      %c0_53 = arith.constant 0 : index
      %c0_54 = arith.constant 0 : index
      %c0_55 = arith.constant 0 : index
      %66 = vector.load %arg6[%c0_52, %c0_53, %c0_54, %c0_55] : memref<1x2x4x128xf32, #tpu.memory_space<vmem>>, vector<1x2x4x128xf32>
      tpu.vector_store %arg6[%c0_52, %c0_53, %c0_54, %c0_55], %65 {strides = array<i32>} : memref<1x2x4x128xf32, #tpu.memory_space<vmem>>, vector<1x2x4x128xf32>,
    } else {
    }
    %3 = tpu.iota {dimensions = array<i32: 1>} : vector<2x4x128xi32>
    %cst = arith.constant 0.000000e+00 : f32
    %4 = vector.broadcast %cst : f32 to vector<2x4x128xf32>
    %cst_1 = arith.constant 0.000000e+00 : f32
    %5 = vector.broadcast %cst_1 : f32 to vector<2x4x128xf32>
    %cst_2 = arith.constant 0.000000e+00 : f32
    %6 = vector.broadcast %cst_2 : f32 to vector<2x4x128xf32>
    %c0 = arith.constant 0 : index
    %c0_3 = arith.constant 0 : index
    %c0_4 = arith.constant 0 : index
    %7 = vector.load %arg2[%c0, %c0_3, %c0_4] : memref<2x4x256xf32, #tpu.memory_space<vmem>>, vector<2x4x128xf32>
    %c0_5 = arith.constant 0 : index
    %c0_6 = arith.constant 0 : index
    %c0_7 = arith.constant 0 : index
    %8 = vector.load %arg3[%c0_5, %c0_6, %c0_7] : memref<2x1x256xi32, #tpu.memory_space<vmem>>, vector<2x1x128xi32>
    %cst_8 = arith.constant dense<0xFF800000> : vector<2x128xf32>
    %9 = vector.multi_reduction <maximumf>, %7, %cst_8 [1] : vector<2x4x128xf32> to vector<2x128xf32>
    %10 = vector.shape_cast %9 : vector<2x128xf32> to vector<2x1x128xf32>
    %11 = vector.broadcast %10 : vector<2x1x128xf32> to vector<2x4x128xf32>
    %12 = arith.subf %7, %11 : vector<2x4x128xf32>
    %13 = math.exp %12 : vector<2x4x128xf32>
    %cst_9 = arith.constant dense<0.000000e+00> : vector<2x128xf32>
    %14 = vector.multi_reduction <add>, %13, %cst_9 [1] : vector<2x4x128xf32> to vector<2x128xf32>
    %15 = vector.shape_cast %14 : vector<2x128xf32> to vector<2x1x128xf32>
    %16 = tpu.reciprocal %15 : vector<2x1x128xf32> -> vector<2x1x128xf32>
    %17 = vector.broadcast %16 : vector<2x1x128xf32> to vector<2x4x128xf32>
    %18 = arith.mulf %13, %17 : vector<2x4x128xf32>
    %19 = vector.broadcast %8 : vector<2x1x128xi32> to vector<2x4x128xi32>
    %20 = arith.cmpi eq, %3, %19 : vector<2x4x128xi32>
    %21 = arith.extui %20 : vector<2x4x128xi1> to vector<2x4x128xi32>
    %22 = arith.sitofp %21 : vector<2x4x128xi32> to vector<2x4x128xf32>
    %23 = arith.mulf %18, %18 : vector<2x4x128xf32>
    %24 = arith.mulf %18, %22 : vector<2x4x128xf32>
    %25 = arith.addf %4, %24 : vector<2x4x128xf32>
    %26 = arith.addf %5, %23 : vector<2x4x128xf32>
    %27 = arith.addf %6, %22 : vector<2x4x128xf32>
    %c0_10 = arith.constant 0 : index
    %c0_11 = arith.constant 0 : index
    %c128 = arith.constant 128 : index
    %28 = vector.load %arg2[%c0_10, %c0_11, %c128] : memref<2x4x256xf32, #tpu.memory_space<vmem>>, vector<2x4x128xf32>
    %c0_12 = arith.constant 0 : index
    %c0_13 = arith.constant 0 : index
    %c128_14 = arith.constant 128 : index
    %29 = vector.load %arg3[%c0_12, %c0_13, %c128_14] : memref<2x1x256xi32, #tpu.memory_space<vmem>>, vector<2x1x128xi32>
    %cst_15 = arith.constant dense<0xFF800000> : vector<2x128xf32>
    %30 = vector.multi_reduction <maximumf>, %28, %cst_15 [1] : vector<2x4x128xf32> to vector<2x128xf32>
    %31 = vector.shape_cast %30 : vector<2x128xf32> to vector<2x1x128xf32>
    %32 = vector.broadcast %31 : vector<2x1x128xf32> to vector<2x4x128xf32>
    %33 = arith.subf %28, %32 : vector<2x4x128xf32>
    %34 = math.exp %33 : vector<2x4x128xf32>
    %cst_16 = arith.constant dense<0.000000e+00> : vector<2x128xf32>
    %35 = vector.multi_reduction <add>, %34, %cst_16 [1] : vector<2x4x128xf32> to vector<2x128xf32>
    %36 = vector.shape_cast %35 : vector<2x128xf32> to vector<2x1x128xf32>
    %37 = tpu.reciprocal %36 : vector<2x1x128xf32> -> vector<2x1x128xf32>
    %38 = vector.broadcast %37 : vector<2x1x128xf32> to vector<2x4x128xf32>
    %39 = arith.mulf %34, %38 : vector<2x4x128xf32>
    %40 = vector.broadcast %29 : vector<2x1x128xi32> to vector<2x4x128xi32>
    %41 = arith.cmpi eq, %3, %40 : vector<2x4x128xi32>
    %42 = arith.extui %41 : vector<2x4x128xi1> to vector<2x4x128xi32>
    %43 = arith.sitofp %42 : vector<2x4x128xi32> to vector<2x4x128xf32>
    %44 = arith.mulf %39, %39 : vector<2x4x128xf32>
    %45 = arith.mulf %39, %43 : vector<2x4x128xf32>
    %46 = arith.addf %25, %45 : vector<2x4x128xf32>
    %47 = arith.addf %26, %44 : vector<2x4x128xf32>
    %48 = arith.addf %27, %43 : vector<2x4x128xf32>
    %c0_17 = arith.constant 0 : index
    %c0_18 = arith.constant 0 : index
    %c0_19 = arith.constant 0 : index
    %c0_20 = arith.constant 0 : index
    %49 = vector.load %arg4[%c0_17, %c0_18, %c0_19, %c0_20] : memref<1x2x4x128xf32, #tpu.memory_space<vmem>>, vector<1x2x4x128xf32>
    %50 = vector.shape_cast %46 : vector<2x4x128xf32> to vector<1x2x4x128xf32>
    %51 = arith.addf %49, %50 : vector<1x2x4x128xf32>
    %c0_21 = arith.constant 0 : index
    %c0_22 = arith.constant 0 : index
    %c0_23 = arith.constant 0 : index
    %c0_24 = arith.constant 0 : index
    %52 = vector.load %arg4[%c0_21, %c0_22, %c0_23, %c0_24] : memref<1x2x4x128xf32, #tpu.memory_space<vmem>>, vector<1x2x4x128xf32>
    tpu.vector_store %arg4[%c0_21, %c0_22, %c0_23, %c0_24], %51 {strides = array<i32>} : memref<1x2x4x128xf32, #tpu.memory_space<vmem>>, vector<1x2x4x128xf32>,
    %c0_25 = arith.constant 0 : index
    %c0_26 = arith.constant 0 : index
    %c0_27 = arith.constant 0 : index
    %c0_28 = arith.constant 0 : index
    %53 = vector.load %arg5[%c0_25, %c0_26, %c0_27, %c0_28] : memref<1x2x4x128xf32, #tpu.memory_space<vmem>>, vector<1x2x4x128xf32>
    %54 = vector.shape_cast %47 : vector<2x4x128xf32> to vector<1x2x4x128xf32>
    %55 = arith.addf %53, %54 : vector<1x2x4x128xf32>
    %c0_29 = arith.constant 0 : index
    %c0_30 = arith.constant 0 : index
    %c0_31 = arith.constant 0 : index
    %c0_32 = arith.constant 0 : index
    %56 = vector.load %arg5[%c0_29, %c0_30, %c0_31, %c0_32] : memref<1x2x4x128xf32, #tpu.memory_space<vmem>>, vector<1x2x4x128xf32>
    tpu.vector_store %arg5[%c0_29, %c0_30, %c0_31, %c0_32], %55 {strides = array<i32>} : memref<1x2x4x128xf32, #tpu.memory_space<vmem>>, vector<1x2x4x128xf32>,
    %c0_33 = arith.constant 0 : index
    %c0_34 = arith.constant 0 : index
    %c0_35 = arith.constant 0 : index
    %c0_36 = arith.constant 0 : index
    %57 = vector.load %arg6[%c0_33, %c0_34, %c0_35, %c0_36] : memref<1x2x4x128xf32, #tpu.memory_space<vmem>>, vector<1x2x4x128xf32>
    %58 = vector.shape_cast %48 : vector<2x4x128xf32> to vector<1x2x4x128xf32>
    %59 = arith.addf %57, %58 : vector<1x2x4x128xf32>
    %c0_37 = arith.constant 0 : index
    %c0_38 = arith.constant 0 : index
    %c0_39 = arith.constant 0 : index
    %c0_40 = arith.constant 0 : index
    %60 = vector.load %arg6[%c0_37, %c0_38, %c0_39, %c0_40] : memref<1x2x4x128xf32, #tpu.memory_space<vmem>>, vector<1x2x4x128xf32>
    tpu.vector_store %arg6[%c0_37, %c0_38, %c0_39, %c0_40], %59 {strides = array<i32>} : memref<1x2x4x128xf32, #tpu.memory_space<vmem>>, vector<1x2x4x128xf32>,
    return
  }
  func.func @transform_0(%arg0: i32, %arg1: i32) -> (i32, i32, i32) {
    %c1_i32 = arith.constant 1 : i32
    %0 = arith.muli %arg0, %c1_i32 : i32
    %1 = arith.addi %0, %arg1 : i32
    %c0_i32 = arith.constant 0 : i32
    %c0_i32_0 = arith.constant 0 : i32
    %c0_i32_1 = arith.constant 0 : i32
    return %c0_i32, %c0_i32_0, %1 : i32, i32, i32
  }
  func.func @transform_1(%arg0: i32, %arg1: i32) -> (i32, i32, i32) {
    %c1_i32 = arith.constant 1 : i32
    %0 = arith.muli %arg0, %c1_i32 : i32
    %1 = arith.addi %0, %arg1 : i32
    %c0_i32 = arith.constant 0 : i32
    %c0_i32_0 = arith.constant 0 : i32
    %c0_i32_1 = arith.constant 0 : i32
    return %c0_i32, %c0_i32_0, %1 : i32, i32, i32
  }
  func.func @transform_2(%arg0: i32, %arg1: i32) -> (i32, i32, i32, i32) {
    %c0_i32 = arith.constant 0 : i32
    %c0_i32_0 = arith.constant 0 : i32
    %c0_i32_1 = arith.constant 0 : i32
    %c0_i32_2 = arith.constant 0 : i32
    return %arg0, %c0_i32, %c0_i32_0, %c0_i32_1 : i32, i32, i32, i32
  }
  func.func @transform_3(%arg0: i32, %arg1: i32) -> (i32, i32, i32, i32) {
    %c0_i32 = arith.constant 0 : i32
    %c0_i32_0 = arith.constant 0 : i32
    %c0_i32_1 = arith.constant 0 : i32
    %c0_i32_2 = arith.constant 0 : i32
    return %arg0, %c0_i32, %c0_i32_0, %c0_i32_1 : i32, i32, i32, i32
  }
  func.func @transform_4(%arg0: i32, %arg1: i32) -> (i32, i32, i32, i32) {
    %c0_i32 = arith.constant 0 : i32
    %c0_i32_0 = arith.constant 0 : i32
    %c0_i32_1 = arith.constant 0 : i32
    %c0_i32_2 = arith.constant 0 : i32
    return %arg0, %c0_i32, %c0_i32_0, %c0_i32_1 : i32, i32, i32, i32
  }
}

</mosaic_0001>

<llo_original>
// kernel: _cdice_partials.1
$region0: #{_cdice_partials.1}
  #allocation0 [shape = 'u32[]', space=smem, size = 0x4, offset = 0x4, fixed_abs, tag = 'smem constant byte address 0x4 - core index']
  #allocation1 [shape = 'u32[72,128]{1,0:T(1,128)}', space=vmem, size = 0x9000, scoped, tag = 'internal scratch']
  %s0 = inlined_call_operand.hbm [shape: f32[2,4,256], index: 0, kind: input, shape index: {}]
  %s1 = inlined_call_operand.hbm [shape: s32[2,1,256], index: 1, kind: input, shape index: {}]
  %s2 = inlined_call_operand.hbm [shape: f32[1,2,4,128], index: 2, kind: output, shape index: {0}]
  %s3 = inlined_call_operand.hbm [shape: f32[1,2,4,128], index: 3, kind: output, shape index: {1}]
  %s4 = inlined_call_operand.hbm [shape: f32[1,2,4,128], index: 4, kind: output, shape index: {2}]
  %5 = xla_tuple %s2, %s3, %s4
  %s6 = sld [smem:[#allocation0]]
  $region46: #{_cdice_partials.1} parent=0
    _
  %s8 = ssub.s32 1, %s6
  %s9 = scalar_select 0, %s8, %s6
  $region1: #{_cdice_partials.1} parent=0
    #allocation2 [shape = 'u8[8192]{0}', space=vmem, size = 0x2000, scoped, tag = 'input window, operand 0, single buffered']
    #allocation3 [shape = 's32[1]{0}', space=sflag, size = 0x4, scoped, tag = 'scoped memory for _cdice_partials.1']
    #allocation4 [shape = 's32[1]{0}', space=sflag, size = 0x4, scoped, tag = 'scoped memory for _cdice_partials.1']
    #allocation5 [shape = 'u8[2048]{0}', space=vmem, size = 0x800, scoped, tag = 'input window, operand 1, single buffered']
    #allocation6 [shape = 's32[1]{0}', space=sflag, size = 0x4, scoped, tag = 'scoped memory for _cdice_partials.1']
    #allocation7 [shape = 'u8[4096]{0}', space=vmem, size = 0x1000, scoped, tag = 'output window, operand 0, single buffered']
    #allocation8 [shape = 'u8[4096]{0}', space=vmem, size = 0x1000, scoped, tag = 'output window, operand 1, single buffered']
    #allocation9 [shape = 's32[1]{0}', space=sflag, size = 0x4, scoped, tag = 'scoped memory for _cdice_partials.1']
    #allocation10 [shape = 'u8[4096]{0}', space=vmem, size = 0x1000, scoped, tag = 'output window, operand 2, single buffered']
    %10 = vsyncpa [#allocation3], 0
    %11 = vsyncpa [#allocation6], 0
    %12 = vsyncpa [#allocation4], 0
    %13 = vsyncpa [#allocation9], 0
    // Predicated region
    $region2: #{_cdice_partials.1} parent=1 // pred_check
      _
    $region3: #{_cdice_partials.1} parent=1 // pred_check_branch
      %15 = sbr.rel (0) target = $region5
    $region4: #{_cdice_partials.1} parent=1 // pred_region
      %s16 = sadd.s32 0, 0
      %s17 = smul.u32 2, %s16
      %19 = vsyncadd [#allocation3], 0
      %s20 = smul.addr %s17, 4
      %s21 = scalar_lea.hbm %s0, %s20
      %s22 = sshll.u32 %s21, 4
      %s23 = int_to_ptr.hbm [resolvable:$true] %s22
      %s24 = sshll.u32 [#allocation2], 4
      %s25 = int_to_ptr.vmem [resolvable:$true] %s24
      %30 = dma.hbm_to_vmem [thread:$0]  %s23, 256, %s25, [#allocation3], 128, 128, 8
    $region5: #{_cdice_partials.1} parent=1 // pred_fallthru
      _
    // Predicated region
    $region6: #{_cdice_partials.1} parent=1 // pred_check
      _
    $region7: #{_cdice_partials.1} parent=1 // pred_check_branch
      %32 = sbr.rel (0) target = $region9
    $region8: #{_cdice_partials.1} parent=1 // pred_region
      %s33 = sadd.s32 0, 0
      %s34 = smul.u32 2, %s33
      %36 = vsyncadd [#allocation6], 0
      %s37 = scalar_lea.hbm %s1, %s34
      %s38 = sshll.u32 %s37, 4
      %s39 = int_to_ptr.hbm [resolvable:$true] %s38
      %s40 = sshll.u32 [#allocation5], 4
      %s41 = int_to_ptr.vmem [resolvable:$true] %s40
      %46 = dma.hbm_to_vmem [thread:$0]  %s39, 64, %s41, [#allocation6], 32, 32, 2
    $region9: #{_cdice_partials.1} parent=1 // pred_fallthru
      _
    // Predicated region
    $region10: #{_cdice_partials.1} parent=1 // pred_check
      _
    $region11: #{_cdice_partials.1} parent=1 // pred_check_branch
      %48 = sbr.rel (0) target = $region13
    $region12: #{_cdice_partials.1} parent=1 // pred_region
      %50 = dma.done [#allocation3], 256
    $region13: #{_cdice_partials.1} parent=1 // pred_fallthru
      _
    // Predicated region
    $region14: #{_cdice_partials.1} parent=1 // pred_check
      _
    $region15: #{_cdice_partials.1} parent=1 // pred_check_branch
      %52 = sbr.rel (0) target = $region17
    $region16: #{_cdice_partials.1} parent=1 // pred_region
      %54 = dma.done [#allocation6], 64
    $region17: #{_cdice_partials.1} parent=1 // pred_fallthru
      _
    %s55 = sadd.s32 0, 0
    %s56 = smul.u32 2, %s55
    %s57 = sadd.s32 0, 0
    %s58 = smul.u32 2, %s57
    %p59 = scmp.eq.s32.totalorder 0, 0
    // Predicated region
    $region18: #{_cdice_partials.1} parent=1 // pred_check
      %p60 = pneg %p59
    $region19: #{_cdice_partials.1} parent=1 // pred_check_branch
      %62 = sbr.rel (%p60) target = $region21
    $region20: #{_cdice_partials.1} parent=1 // pred_region
      %63 = vst [vmem:[#allocation7] sm:$0xf] 0.0
      %64 = vst [vmem:[#allocation7 + $0x4] sm:$0xf] 0.0
      %65 = vst [vmem:[#allocation8] sm:$0xf] 0.0
      %66 = vst [vmem:[#allocation8 + $0x4] sm:$0xf] 0.0
      %67 = vst [vmem:[#allocation10] sm:$0xf] 0.0
      %68 = vst [vmem:[#allocation10 + $0x4] sm:$0xf] 0.0
    $region21: #{_cdice_partials.1} parent=1 // pred_fallthru
      _
    %v69 = vlaneseq
    %v70 = vshrl.u32 %v69, 7
    %v71 = vld [vmem:[#allocation2] sm:$0xf]
    %v72 = vld [vmem:[#allocation2 + $0x8] sm:$0xf]
    %v73 = vld [vmem:[#allocation5] sm:$0x1]
    %v74 = vld [vmem:[#allocation5 + $0x2] sm:$0x1]
    %vm75 = vcmask 1043456
    %v76 = vsel %vm75, %v71, -inf
    %v77 = vrot.slane %v76, 4
    %v78 = vmax.f32 %v76, %v77
    %v79 = vrot.slane %v78, 2
    %v80 = vmax.f32 %v78, %v79
    %v81 = vrot.slane %v80, 1
    %v82 = vmax.f32 %v80, %v81
    %v83 = vsel %vm75, %v72, -inf
    %v84 = vrot.slane %v83, 4
    %v85 = vmax.f32 %v83, %v84
    %v86 = vrot.slane %v85, 2
    %v87 = vmax.f32 %v85, %v86
    %v88 = vrot.slane %v87, 1
    %v89 = vmax.f32 %v87, %v88
    %v90 = vsub.f32 %v71, %v82
    %v91 = vsub.f32 %v72, %v89
    %v92 = vmul.f32 %v90, 1.442695
    %v93 = vpow.pop %v92
    %v94 = vmul.f32 %v91, 1.442695
    %v95 = vpow.pop %v94
    %v96 = vsel %vm75, %v93, 0.0
    %v97 = vrot.slane %v96, 4
    %v98 = vadd.f32 %v96, %v97
    %v99 = vrot.slane %v98, 2
    %v100 = vadd.f32 %v98, %v99
    %v101 = vrot.slane %v100, 1
    %v102 = vadd.f32 %v100, %v101
    %v103 = vsel %vm75, %v95, 0.0
    %v104 = vrot.slane %v103, 4
    %v105 = vadd.f32 %v103, %v104
    %v106 = vrot.slane %v105, 2
    %v107 = vadd.f32 %v105, %v106
    %v108 = vrot.slane %v107, 1
    %v109 = vadd.f32 %v107, %v108
    %v110 = vrcp.pop %v102
    %v111 = vmul.f32 %v102, %v110
    %v112 = vsub.f32 1.0, %v111
    %v113 = vmul.f32 %v110, %v112
    %v114 = vadd.f32 %v110, %v113
    %vm115 = vweird.f32 %v102
    %vm116 = vweird.f32 %v110
    %vm117 = vmor %vm115, %vm116
    %v118 = vsel %vm117, %v110, %v114
    %v119 = vand.u32 2147483647, %v102
    %vm120 = vcmp.eq.f32.partialorder %v119, 8.507059e+37
    %v121 = vand.u32 %v102, 2147483648
    %v122 = vor.u32 1.1754944e-38, %v121
    %v123 = vsel %vm120, %v122, %v118
    %v124 = vrcp.pop %v109
    %v125 = vmul.f32 %v109, %v124
    %v126 = vsub.f32 1.0, %v125
    %v127 = vmul.f32 %v124, %v126
    %v128 = vadd.f32 %v124, %v127
    %vm129 = vweird.f32 %v109
    %vm130 = vweird.f32 %v124
    %vm131 = vmor %vm129, %vm130
    %v132 = vsel %vm131, %v124, %v128
    %v133 = vand.u32 2147483647, %v109
    %vm134 = vcmp.eq.f32.partialorder %v133, 8.507059e+37
    %v135 = vand.u32 %v109, 2147483648
    %v136 = vor.u32 1.1754944e-38, %v135
    %v137 = vsel %vm134, %v136, %v132
    %v138 = vmul.f32 %v93, %v123
    %v139 = vmul.f32 %v95, %v137
    %v140 = vperm.slane %v73, 0
    %v141 = vperm.slane %v74, 0
    %vm142 = vcmp.eq.s32.totalorder %v70, %v140
    %vm143 = vcmp.eq.s32.totalorder %v70, %v141
    %v144 = vsel %vm142, 1, 0
    %v145 = vsel %vm143, 1, 0
    %v146 = vcvt.s32.f32 %v144
    %v147 = vcvt.s32.f32 %v145
    %v148 = vmul.f32 %v138, %v138
    %v149 = vmul.f32 %v139, %v139
    %v150 = vmul.f32 %v138, %v146
    %v151 = vmul.f32 %v139, %v147
    %v152 = vadd.f32 %v150, 0.0
    %v153 = vadd.f32 %v151, 0.0
    %v154 = vadd.f32 %v148, 0.0
    %v155 = vadd.f32 %v149, 0.0
    %v156 = vadd.f32 %v146, 0.0
    %v157 = vadd.f32 %v147, 0.0
    %v158 = vld [vmem:[#allocation2 + $0x4] sm:$0xf]
    %v159 = vld [vmem:[#allocation2 + $0xc] sm:$0xf]
    %v160 = vld [vmem:[#allocation5 + $0x1] sm:$0x1]
    %v161 = vld [vmem:[#allocation5 + $0x3] sm:$0x1]
    %v162 = vsel %vm75, %v158, -inf
    %v163 = vrot.slane %v162, 4
    %v164 = vmax.f32 %v162, %v163
    %v165 = vrot.slane %v164, 2
    %v166 = vmax.f32 %v164, %v165
    %v167 = vrot.slane %v166, 1
    %v168 = vmax.f32 %v166, %v167
    %v169 = vsel %vm75, %v159, -inf
    %v170 = vrot.slane %v169, 4
    %v171 = vmax.f32 %v169, %v170
    %v172 = vrot.slane %v171, 2
    %v173 = vmax.f32 %v171, %v172
    %v174 = vrot.slane %v173, 1
    %v175 = vmax.f32 %v173, %v174
    %v176 = vsub.f32 %v158, %v168
    %v177 = vsub.f32 %v159, %v175
    %v178 = vmul.f32 %v176, 1.442695
    %v179 = vpow.pop %v178
    %v180 = vmul.f32 %v177, 1.442695
    %v181 = vpow.pop %v180
    %v182 = vsel %vm75, %v179, 0.0
    %v183 = vrot.slane %v182, 4
    %v184 = vadd.f32 %v182, %v183
    %v185 = vrot.slane %v184, 2
    %v186 = vadd.f32 %v184, %v185
    %v187 = vrot.slane %v186, 1
    %v188 = vadd.f32 %v186, %v187
    %v189 = vsel %vm75, %v181, 0.0
    %v190 = vrot.slane %v189, 4
    %v191 = vadd.f32 %v189, %v190
    %v192 = vrot.slane %v191, 2
    %v193 = vadd.f32 %v191, %v192
    %v194 = vrot.slane %v193, 1
    %v195 = vadd.f32 %v193, %v194
    %v196 = vrcp.pop %v188
    %v197 = vmul.f32 %v188, %v196
    %v198 = vsub.f32 1.0, %v197
    %v199 = vmul.f32 %v196, %v198
    %v200 = vadd.f32 %v196, %v199
    %vm201 = vweird.f32 %v188
    %vm202 = vweird.f32 %v196
    %vm203 = vmor %vm201, %vm202
    %v204 = vsel %vm203, %v196, %v200
    %v205 = vand.u32 2147483647, %v188
    %vm206 = vcmp.eq.f32.partialorder %v205, 8.507059e+37
    %v207 = vand.u32 %v188, 2147483648
    %v208 = vor.u32 1.1754944e-38, %v207
    %v209 = vsel %vm206, %v208, %v204
    %v210 = vrcp.pop %v195
    %v211 = vmul.f32 %v195, %v210
    %v212 = vsub.f32 1.0, %v211
    %v213 = vmul.f32 %v210, %v212
    %v214 = vadd.f32 %v210, %v213
    %vm215 = vweird.f32 %v195
    %vm216 = vweird.f32 %v210
    %vm217 = vmor %vm215, %vm216
    %v218 = vsel %vm217, %v210, %v214
    %v219 = vand.u32 2147483647, %v195
    %vm220 = vcmp.eq.f32.partialorder %v219, 8.507059e+37
    %v221 = vand.u32 %v195, 2147483648
    %v222 = vor.u32 1.1754944e-38, %v221
    %v223 = vsel %vm220, %v222, %v218
    %v224 = vmul.f32 %v179, %v209
    %v225 = vmul.f32 %v181, %v223
    %v226 = vperm.slane %v160, 0
    %v227 = vperm.slane %v161, 0
    %vm228 = vcmp.eq.s32.totalorder %v70, %v226
    %vm229 = vcmp.eq.s32.totalorder %v70, %v227
    %v230 = vsel %vm228, 1, 0
    %v231 = vsel %vm229, 1, 0
    %v232 = vcvt.s32.f32 %v230
    %v233 = vcvt.s32.f32 %v231
    %v234 = vmul.f32 %v224, %v224
    %v235 = vmul.f32 %v225, %v225
    %v236 = vmul.f32 %v224, %v232
    %v237 = vmul.f32 %v225, %v233
    %v238 = vadd.f32 %v152, %v236
    %v239 = vadd.f32 %v153, %v237
    %v240 = vadd.f32 %v154, %v234
    %v241 = vadd.f32 %v155, %v235
    %v242 = vadd.f32 %v156, %v232
    %v243 = vadd.f32 %v157, %v233
    %v244 = vld [vmem:[#allocation7] sm:$0xf]
    %v245 = vld [vmem:[#allocation7 + $0x4] sm:$0xf]
    %v246 = vadd.f32 %v244, %v238
    %v247 = vadd.f32 %v245, %v239
    %248 = vst [vmem:[#allocation7] sm:$0xf] %v246
    %249 = vst [vmem:[#allocation7 + $0x4] sm:$0xf] %v247
    %v250 = vld [vmem:[#allocation8] sm:$0xf]
    %v251 = vld [vmem:[#allocation8 + $0x4] sm:$0xf]
    %v252 = vadd.f32 %v250, %v240
    %v253 = vadd.f32 %v251, %v241
    %254 = vst [vmem:[#allocation8] sm:$0xf] %v252
    %255 = vst [vmem:[#allocation8 + $0x4] sm:$0xf] %v253
    %v256 = vld [vmem:[#allocation10] sm:$0xf]
    %v257 = vld [vmem:[#allocation10 + $0x4] sm:$0xf]
    %v258 = vadd.f32 %v256, %v242
    %v259 = vadd.f32 %v257, %v243
    %260 = vst [vmem:[#allocation10] sm:$0xf] %v258
    %261 = vst [vmem:[#allocation10 + $0x4] sm:$0xf] %v259
    // Predicated region
    $region22: #{_cdice_partials.1} parent=1 // pred_check
      _
    $region23: #{_cdice_partials.1} parent=1 // pred_check_branch
      %263 = sbr.rel (0) target = $region25
    $region24: #{_cdice_partials.1} parent=1 // pred_region
      %265 = vsyncadd [#allocation4], 0
      %s266 = sshll.u32 [#allocation7], 4
      %s267 = int_to_ptr.vmem [resolvable:$true] %s266
      %s268 = sshll.u32 %s2, 4
      %s269 = int_to_ptr.hbm [resolvable:$true] %s268
      %274 = dma.vmem_to_hbm [thread:$0]  %s267, 128, %s269, [#allocation4], 64, 64, 4
    $region25: #{_cdice_partials.1} parent=1 // pred_fallthru
      _
    // Predicated region
    $region26: #{_cdice_partials.1} parent=1 // pred_check
      _
    $region27: #{_cdice_partials.1} parent=1 // pred_check_branch
      %276 = sbr.rel (0) target = $region29
    $region28: #{_cdice_partials.1} parent=1 // pred_region
      %278 = vsyncadd [#allocation9], 0
      %s279 = sshll.u32 [#allocation8], 4
      %s280 = int_to_ptr.vmem [resolvable:$true] %s279
      %s281 = sshll.u32 %s3, 4
      %s282 = int_to_ptr.hbm [resolvable:$true] %s281
      %287 = dma.vmem_to_hbm [thread:$0]  %s280, 128, %s282, [#allocation9], 64, 64, 4
    $region29: #{_cdice_partials.1} parent=1 // pred_fallthru
      _
    // Predicated region
    $region30: #{_cdice_partials.1} parent=1 // pred_check
      _
    $region31: #{_cdice_partials.1} parent=1 // pred_check_branch
      %289 = sbr.rel (0) target = $region33
    $region32: #{_cdice_partials.1} parent=1 // pred_region
      %291 = vsyncadd [#allocation9], 0
      %s292 = sshll.u32 [#allocation10], 4
      %s293 = int_to_ptr.vmem [resolvable:$true] %s292
      %s294 = sshll.u32 %s4, 4
      %s295 = int_to_ptr.hbm [resolvable:$true] %s294
      %300 = dma.vmem_to_hbm [thread:$0]  %s293, 128, %s295, [#allocation9], 64, 64, 4
    $region33: #{_cdice_partials.1} parent=1 // pred_fallthru
      _
    // Predicated region
    $region34: #{_cdice_partials.1} parent=1 // pred_check
      _
    $region35: #{_cdice_partials.1} parent=1 // pred_check_branch
      %302 = sbr.rel (0) target = $region37
    $region36: #{_cdice_partials.1} parent=1 // pred_region
      %304 = dma.done [#allocation4], 128
    $region37: #{_cdice_partials.1} parent=1 // pred_fallthru
      _
    // Predicated region
    $region38: #{_cdice_partials.1} parent=1 // pred_check
      _
    $region39: #{_cdice_partials.1} parent=1 // pred_check_branch
      %306 = sbr.rel (0) target = $region41
    $region40: #{_cdice_partials.1} parent=1 // pred_region
      %308 = dma.done [#allocation9], 128
    $region41: #{_cdice_partials.1} parent=1 // pred_fallthru
      _
    // Predicated region
    $region42: #{_cdice_partials.1} parent=1 // pred_check
      _
    $region43: #{_cdice_partials.1} parent=1 // pred_check_branch
      %310 = sbr.rel (0) target = $region45
    $region44: #{_cdice_partials.1} parent=1 // pred_region
      %312 = dma.done [#allocation9], 128
    $region45: #{_cdice_partials.1} parent=1 // pred_fallthru
      _
    %313 = vsyncpa [#allocation3], 1
    %314 = vsyncpa [#allocation6], 1
    %315 = vsyncpa [#allocation4], 1
    %316 = vsyncpa [#allocation9], 1

</llo_original>
